<compile_context>
chip_gen: v7x
topology: tpu7x:2x2x1
jax: 0.10.0
libtpu: 0.0.40
codegen_flags: <defaults>
</compile_context>

<pallas_src>
import functools

import jax
import jax.numpy as jnp
from jax.experimental import pallas as pl
from jax.experimental.pallas import tpu as pltpu

LANE = 128          # vreg lane width
TILE_R_MAX = 2048   # max rows per grid step (1 MiB f32 per input block)
NUM_SPLITS_MAX = 2  # shard the reduction across TensorCores (v7x megacore)


def _recon_dist_kernel(re_ref, gt_ref, out_ref, acc_ref, *,
                       p, rows, nb_per, need_mask):
    """Per-core accumulation of sum(|re-gt|^p) into a VMEM vector accumulator.

    Grid is (num_splits, nb_per): axis 0 = core split ("parallel"),
    axis 1 = row-tile reduction ("arbitrary").  out_ref is one (1,1) SMEM
    scalar per core; the wrapper sums the per-core partials.
    """
    c = pl.program_id(0)
    j = pl.program_id(1)

    @pl.when(j == 0)
    def _():
        acc_ref[...] = jnp.zeros_like(acc_ref)

    d = re_ref[...].astype(jnp.float32) - gt_ref[...].astype(jnp.float32)
    term = jnp.abs(d) if p == 1 else d * d

    if need_mask:
        # Mask rows past the logical end (partial last tile and any fully
        # out-of-range tiles created by the core split).  The DMA itself is
        # kept in-bounds by the clamped index_map; masking uses logical rows.
        tile_r = acc_ref.shape[0]
        block = c * nb_per + j
        row_ids = block * tile_r + jax.lax.broadcasted_iota(
            jnp.int32, acc_ref.shape, 0)
        term = jnp.where(row_ids < rows, term, 0.0)

    acc_ref[...] += term            # pure VPU, hides under the input DMA

    @pl.when(j == nb_per - 1)
    def _():
        out_ref[0, 0] = jnp.sum(acc_ref[...])   # single cross-lane reduce


def _as_lane_major(x, rows, lane_pad):
    """View `x` as a (rows, 128) slab in its ORIGINAL dtype.

    When numel % 128 == 0 this is a pure reshape (no copy / extra HBM
    traffic).  Otherwise only the lane tail is zero-padded (zero diff, so the
    pad never affects the sum).
    """
    xf = jnp.ravel(x)
    if lane_pad:
        xf = jnp.pad(xf, (0, rows * LANE - xf.shape[0]))
    return xf.reshape(rows, LANE)


def reconstruction_loss(re_img, gt_img, dist_metric="L1"):
    """Pallas implementation of ReconstructionLoss.forward (NCHW inputs)."""
    p = 1 if dist_metric == "L1" else 2
    b, c, h, w = gt_img.shape
    n = b * c * h * w

    lane_pad = (n % LANE) != 0
    rows = pl.cdiv(n, LANE)

    re2 = _as_lane_major(re_img, rows, lane_pad)
    gt2 = _as_lane_major(gt_img, rows, lane_pad)

    # Row tiling: a single full-array block for small inputs, else 2048-row
    # tiles (multiple of 32 sublanes -> valid for f32 / bf16 / int8 blocks).
    tile_r = rows if rows <= TILE_R_MAX else TILE_R_MAX
    nb = pl.cdiv(rows, tile_r)                        # total row tiles
    num_splits = NUM_SPLITS_MAX if nb >= NUM_SPLITS_MAX else 1
    nb_per = pl.cdiv(nb, num_splits)                  # tiles per core
    need_mask = (num_splits * nb_per * tile_r) != rows

    def in_map(ci, ji):
        # Clamp so the DMA window always stays inside the array; logically
        # out-of-range tiles are zeroed by the in-kernel row mask.
        return (jnp.minimum(ci * nb_per + ji, nb - 1), 0)

    kernel = functools.partial(
        _recon_dist_kernel, p=p, rows=rows, nb_per=nb_per, need_mask=need_mask)

    partials = pl.pallas_call(
        kernel,
        out_shape=jax.ShapeDtypeStruct((num_splits, 1), jnp.float32),
        grid_spec=pltpu.PrefetchScalarGridSpec(
            num_scalar_prefetch=0,
            grid=(num_splits, nb_per),
            in_specs=[
                pl.BlockSpec((tile_r, LANE), in_map),
                pl.BlockSpec((tile_r, LANE), in_map),
            ],
            out_specs=pl.BlockSpec((1, 1), lambda ci, ji: (ci, 0),
                                   memory_space=pltpu.SMEM),
            scratch_shapes=[pltpu.VMEM((tile_r, LANE), jnp.float32)],
        ),
        compiler_params=pltpu.CompilerParams(
            dimension_semantics=("parallel", "arbitrary"),
            # Raise v5e's 16 MiB scoped-VMEM default; matches v6e/v7x default.
            vmem_limit_bytes=32 * 1024 * 1024,
        ),
    )(re2, gt2)

    dist_sum = jnp.sum(partials)
    if p == 2:
        dist_sum = jnp.sqrt(dist_sum)
    # NOTE: divide by (b*h*w) (channel dim excluded) — faithful to the
    # quoted PyTorch code `torch.dist(...) / (b * h * w)`.
    return dist_sum / jnp.float32(b * h * w)


if __name__ == "__main__":
    key = jax.random.PRNGKey(0)
    k1, k2 = jax.random.split(key)

    # NCHW, matching the PyTorch module: b=2, c=4, h=16, w=16.
    re_img = jax.random.normal(k1, (2, 4, 16, 16), dtype=jnp.float32)
    gt_img = jax.random.normal(k2, (2, 4, 16, 16), dtype=jnp.float32)
    b, c, h, w = gt_img.shape

    l1_fn = jax.jit(functools.partial(reconstruction_loss, dist_metric="L1"))
    l2_fn = jax.jit(functools.partial(reconstruction_loss, dist_metric="L2"))

    loss_l1 = jax.block_until_ready(l1_fn(re_img, gt_img))
    loss_l2 = jax.block_until_ready(l2_fn(re_img, gt_img))

    # Silent sanity checks against pure-JAX references (torch.dist semantics).
    ref_l1 = jnp.sum(jnp.abs(re_img - gt_img)) / (b * h * w)
    ref_l2 = jnp.sqrt(jnp.sum((re_img - gt_img) ** 2)) / (b * h * w)
    assert jnp.allclose(loss_l1, ref_l1, rtol=1e-5, atol=1e-5)
    assert jnp.allclose(loss_l2, ref_l2, rtol=1e-5, atol=1e-5)

    print("KERNEL_OK")
</pallas_src>

<mosaic_0001>
module attributes {stable_mosaic.version = 11 : i64} {
  func.func @_recon_dist_kernel(%arg0: i32, %arg1: i32, %arg2: memref<16x128xf32, #tpu.memory_space<vmem>>, %arg3: memref<16x128xf32, #tpu.memory_space<vmem>>, %arg4: memref<1x1xf32, #tpu.memory_space<smem>>, %arg5: memref<16x128xf32, #tpu.memory_space<vmem>>) attributes {dimension_semantics = [#tpu.dimension_semantics<parallel>, #tpu.dimension_semantics<arbitrary>], iteration_bounds = array<i64: 1, 1>, scalar_prefetch = 0 : i64, scratch_operands = 1 : i64, tpu.core_type = #tpu.core_type<tc>, window_params = [{transform_indices = @transform_0, window_bounds = array<i64: 16, 128>}, {transform_indices = @transform_1, window_bounds = array<i64: 16, 128>}, {transform_indices = @transform_2, window_bounds = array<i64: 1, 1>}]} {
    %c0_i32 = arith.constant 0 : i32
    %0 = arith.cmpi eq, %arg1, %c0_i32 : i32
    %1 = arith.extui %0 : i1 to i32
    %c0_i32_0 = arith.constant 0 : i32
    %2 = arith.cmpi ne, %1, %c0_i32_0 : i32
    scf.if %2 {
      %cst = arith.constant 0.000000e+00 : f32
      %13 = vector.broadcast %cst : f32 to vector<16x128xf32>
      %c0_10 = arith.constant 0 : index
      %c0_11 = arith.constant 0 : index
      %14 = vector.load %arg5[%c0_10, %c0_11] : memref<16x128xf32, #tpu.memory_space<vmem>>, vector<16x128xf32>
      tpu.vector_store %arg5[%c0_10, %c0_11], %13 {strides = array<i32>} : memref<16x128xf32, #tpu.memory_space<vmem>>, vector<16x128xf32>,
    } else {
    }
    %c0 = arith.constant 0 : index
    %c0_1 = arith.constant 0 : index
    %3 = vector.load %arg2[%c0, %c0_1] : memref<16x128xf32, #tpu.memory_space<vmem>>, vector<16x128xf32>
    %c0_2 = arith.constant 0 : index
    %c0_3 = arith.constant 0 : index
    %4 = vector.load %arg3[%c0_2, %c0_3] : memref<16x128xf32, #tpu.memory_space<vmem>>, vector<16x128xf32>
    %5 = arith.subf %3, %4 : vector<16x128xf32>
    %6 = math.absf %5 : vector<16x128xf32>
    %c0_4 = arith.constant 0 : index
    %c0_5 = arith.constant 0 : index
    %7 = vector.load %arg5[%c0_4, %c0_5] : memref<16x128xf32, #tpu.memory_space<vmem>>, vector<16x128xf32>
    %8 = arith.addf %7, %6 : vector<16x128xf32>
    %c0_6 = arith.constant 0 : index
    %c0_7 = arith.constant 0 : index
    %9 = vector.load %arg5[%c0_6, %c0_7] : memref<16x128xf32, #tpu.memory_space<vmem>>, vector<16x128xf32>
    tpu.vector_store %arg5[%c0_6, %c0_7], %8 {strides = array<i32>} : memref<16x128xf32, #tpu.memory_space<vmem>>, vector<16x128xf32>,
    %c0_i32_8 = arith.constant 0 : i32
    %10 = arith.cmpi eq, %arg1, %c0_i32_8 : i32
    %11 = arith.extui %10 : i1 to i32
    %c0_i32_9 = arith.constant 0 : i32
    %12 = arith.cmpi ne, %11, %c0_i32_9 : i32
    scf.if %12 {
      %c0_10 = arith.constant 0 : index
      %c0_11 = arith.constant 0 : index
      %13 = vector.load %arg5[%c0_10, %c0_11] : memref<16x128xf32, #tpu.memory_space<vmem>>, vector<16x128xf32>
      %14 = vector.shape_cast %13 : vector<16x128xf32> to vector<1x16x128xf32>
      %cst = arith.constant dense<0.000000e+00> : vector<1xf32>
      %15 = vector.multi_reduction <add>, %14, %cst [1, 2] : vector<1x16x128xf32> to vector<1xf32>
      %16 = vector.shape_cast %15 : vector<1xf32> to vector<1x1x1xf32>
      %17 = vector.extract %16[0, 0, 0] : f32 from vector<1x1x1xf32>
      %c0_12 = arith.constant 0 : index
      %c0_13 = arith.constant 0 : index
      %18 = memref.load %arg4[%c0_12, %c0_13] : memref<1x1xf32, #tpu.memory_space<smem>>
      memref.store %17, %arg4[%c0_12, %c0_13] : memref<1x1xf32, #tpu.memory_space<smem>>
    } else {
    }
    return
  }
  func.func @transform_0(%arg0: i32, %arg1: i32) -> (i32, i32) {
    %c1_i32 = arith.constant 1 : i32
    %0 = arith.muli %arg0, %c1_i32 : i32
    %1 = arith.addi %0, %arg1 : i32
    %c0_i32 = arith.constant 0 : i32
    %2 = arith.minsi %1, %c0_i32 : i32
    %c0_i32_0 = arith.constant 0 : i32
    %c0_i32_1 = arith.constant 0 : i32
    return %2, %c0_i32_0 : i32, i32
  }
  func.func @transform_1(%arg0: i32, %arg1: i32) -> (i32, i32) {
    %c1_i32 = arith.constant 1 : i32
    %0 = arith.muli %arg0, %c1_i32 : i32
    %1 = arith.addi %0, %arg1 : i32
    %c0_i32 = arith.constant 0 : i32
    %2 = arith.minsi %1, %c0_i32 : i32
    %c0_i32_0 = arith.constant 0 : i32
    %c0_i32_1 = arith.constant 0 : i32
    return %2, %c0_i32_0 : i32, i32
  }
  func.func @transform_2(%arg0: i32, %arg1: i32) -> (i32, i32) {
    %c0_i32 = arith.constant 0 : i32
    %c0_i32_0 = arith.constant 0 : i32
    return %arg0, %c0_i32 : i32, i32
  }
}

</mosaic_0001>

<llo_original>
// kernel: reconstruction_loss.1
$region0: #{reconstruction_loss.1}
  #allocation0 [shape = 'u32[]', space=smem, size = 0x4, offset = 0x4, fixed_abs, tag = 'smem constant byte address 0x4 - core index']
  #allocation1 [shape = 'u32[144,128]{1,0:T(1,128)}', space=vmem, size = 0x12000, scoped, tag = 'internal scratch']
  #allocation2 [shape = 'f32[16,128]{1,0:T(8,128)}', space=vmem, size = 0x2000, scoped, tag = 'scratch operand']
  %s0 = inlined_call_operand.vmem [shape: f32[16,128], index: 0, kind: input, shape index: {}]
  %s1 = inlined_call_operand.vmem [shape: f32[16,128], index: 1, kind: input, shape index: {}]
  %s2 = inlined_call_operand.hbm [shape: f32[1,1], index: 2, kind: output, shape index: {}]
  %s3 = sld [smem:[#allocation0]]
  $region26: #{reconstruction_loss.1} parent=0
    _
  %s5 = ssub.s32 1, %s3
  %s6 = scalar_select 0, %s5, %s3
  $region1: #{reconstruction_loss.1} parent=0
    #allocation3 [shape = 'u8[512]{0}', space=smem, size = 0x200, scoped, tag = 'output window, operand 0, single buffered']
    #allocation4 [shape = 's32[1]{0}', space=sflag, size = 0x4, scoped, tag = 'scoped memory for reconstruction_loss.1']
    %7 = vsyncpa [#allocation4], 0
    // Predicated region
    $region2: #{reconstruction_loss.1} parent=1 // pred_check
      _
    $region3: #{reconstruction_loss.1} parent=1 // pred_check_branch
      %9 = sbr.rel (0) target = $region5
    $region4: #{reconstruction_loss.1} parent=1 // pred_region
      %s10 = sadd.s32 0, 0
      %p11 = scmp.lt.s32.totalorder %s10, 0
      %s12 = scalar_select %p11, %s10, 0
      %s13 = smul.u32 2, %s12
      %p14 = scmp.lt.s32.totalorder %s13, 1
      %s15 = scalar_select %p14, %s13, 1
      %s16 = smul.addr %s15, 8
      %s17 = scalar_lea.vmem %s0, %s16
      %s18 = sadd.s32 0, 0
      %p19 = scmp.lt.s32.totalorder %s18, 0
      %s20 = scalar_select %p19, %s18, 0
      %s21 = smul.u32 2, %s20
    $region5: #{reconstruction_loss.1} parent=1 // pred_fallthru
      _
    // Predicated region
    $region6: #{reconstruction_loss.1} parent=1 // pred_check
      _
    $region7: #{reconstruction_loss.1} parent=1 // pred_check_branch
      %23 = sbr.rel (0) target = $region9
    $region8: #{reconstruction_loss.1} parent=1 // pred_region
      %s24 = sadd.s32 0, 0
      %p25 = scmp.lt.s32.totalorder %s24, 0
      %s26 = scalar_select %p25, %s24, 0
      %s27 = smul.u32 2, %s26
      %p28 = scmp.lt.s32.totalorder %s27, 1
      %s29 = scalar_select %p28, %s27, 1
      %s30 = smul.addr %s29, 8
      %s31 = scalar_lea.vmem %s1, %s30
      %s32 = sadd.s32 0, 0
      %p33 = scmp.lt.s32.totalorder %s32, 0
      %s34 = scalar_select %p33, %s32, 0
      %s35 = smul.u32 2, %s34
    $region9: #{reconstruction_loss.1} parent=1 // pred_fallthru
      _
    %s36 = sadd.s32 0, 0
    %p37 = scmp.lt.s32.totalorder %s36, 0
    %s38 = scalar_select %p37, %s36, 0
    %s39 = smul.u32 2, %s38
    %p40 = scmp.lt.s32.totalorder %s39, 1
    %s41 = scalar_select %p40, %s39, 1
    %s42 = smul.addr %s41, 8
    %s43 = scalar_lea.vmem %s0, %s42
    %s44 = sadd.s32 0, 0
    %p45 = scmp.lt.s32.totalorder %s44, 0
    %s46 = scalar_select %p45, %s44, 0
    %s47 = smul.u32 2, %s46
    %p48 = scmp.lt.s32.totalorder %s47, 1
    %s49 = scalar_select %p48, %s47, 1
    %s50 = smul.addr %s49, 8
    %s51 = scalar_lea.vmem %s1, %s50
    %s52 = sadd.s32 0, 0
    %p53 = scmp.lt.s32.totalorder %s52, 0
    %s54 = scalar_select %p53, %s52, 0
    %s55 = smul.u32 2, %s54
    %p56 = scmp.lt.s32.totalorder %s55, 1
    %s57 = scalar_select %p56, %s55, 1
    %s58 = smul.addr %s57, 8
    %s59 = scalar_lea.vmem %s0, %s58
    %s60 = sadd.s32 0, 0
    %p61 = scmp.lt.s32.totalorder %s60, 0
    %s62 = scalar_select %p61, %s60, 0
    %s63 = smul.u32 2, %s62
    %s64 = sadd.s32 0, 0
    %p65 = scmp.lt.s32.totalorder %s64, 0
    %s66 = scalar_select %p65, %s64, 0
    %s67 = smul.u32 2, %s66
    %p68 = scmp.lt.s32.totalorder %s67, 1
    %s69 = scalar_select %p68, %s67, 1
    %s70 = smul.addr %s69, 8
    %s71 = scalar_lea.vmem %s1, %s70
    %s72 = sadd.s32 0, 0
    %p73 = scmp.lt.s32.totalorder %s72, 0
    %s74 = scalar_select %p73, %s72, 0
    %s75 = smul.u32 2, %s74
    %p76 = scmp.eq.s32.totalorder 0, 0
    // Predicated region
    $region10: #{reconstruction_loss.1} parent=1 // pred_check
      %p77 = pneg %p76
    $region11: #{reconstruction_loss.1} parent=1 // pred_check_branch
      %79 = sbr.rel (%p77) target = $region13
    $region12: #{reconstruction_loss.1} parent=1 // pred_region
      %80 = vst [vmem:[#allocation2] sm:$0xff] 0.0
      %81 = vst [vmem:[#allocation2 + $0x8] sm:$0xff] 0.0
    $region13: #{reconstruction_loss.1} parent=1 // pred_fallthru
      _
    %v82 = vld [vmem:[%s59] sm:$0xff]
    %v83 = vld [vmem:[%s59 + $0x8] sm:$0xff]
    %v84 = vld [vmem:[%s71] sm:$0xff]
    %v85 = vld [vmem:[%s71 + $0x8] sm:$0xff]
    %v86 = vsub.f32 %v82, %v84
    %v87 = vsub.f32 %v83, %v85
    %v88 = vand.u32 2147483647, %v86
    %v89 = vand.u32 2147483647, %v87
    %v90 = vld [vmem:[#allocation2] sm:$0xff]
    %v91 = vld [vmem:[#allocation2 + $0x8] sm:$0xff]
    %v92 = vadd.f32 %v90, %v88
    %v93 = vadd.f32 %v91, %v89
    %94 = vst [vmem:[#allocation2] sm:$0xff] %v92
    %95 = vst [vmem:[#allocation2 + $0x8] sm:$0xff] %v93
    // Predicated region
    $region14: #{reconstruction_loss.1} parent=1 // pred_check
      %p96 = pneg %p76
    $region15: #{reconstruction_loss.1} parent=1 // pred_check_branch
      %98 = sbr.rel (%p96) target = $region17
    $region16: #{reconstruction_loss.1} parent=1 // pred_region
      %v99 = vld [vmem:[#allocation2] sm:$0xff]
      %v100 = vld [vmem:[#allocation2 + $0x8] sm:$0xff]
      %v101 = vadd.f32 %v99, %v100
      %102 = vadd.xlane.f32.xlu0 %v101
      %v103 = vpop.xlane.xlu0 %102
      %v104 = vrot.slane %v103, 4
      %v105 = vadd.f32 %v103, %v104
      %v106 = vrot.slane %v105, 2
      %v107 = vadd.f32 %v105, %v106
      %v108 = vrot.slane %v107, 1
      %v109 = vadd.f32 %v107, %v108
      %s110 = vtos %v109
      %s111 = scalar_lea.smem [#allocation3], 0
      %112 = sst [smem:[%s111]] %s110
    $region17: #{reconstruction_loss.1} parent=1 // pred_fallthru
      _
    // Predicated region
    $region18: #{reconstruction_loss.1} parent=1 // pred_check
      _
    $region19: #{reconstruction_loss.1} parent=1 // pred_check_branch
      %114 = sbr.rel (0) target = $region21
    $region20: #{reconstruction_loss.1} parent=1 // pred_region
      %s116 = ssub.s32 16, 16
      %117 = vsyncadd [#allocation4], %s116
      %120 = dma.smem_to_hbm [#allocation3], 16, %s2, [#allocation4]
    $region21: #{reconstruction_loss.1} parent=1 // pred_fallthru
      _
    // Predicated region
    $region22: #{reconstruction_loss.1} parent=1 // pred_check
      _
    $region23: #{reconstruction_loss.1} parent=1 // pred_check_branch
      %122 = sbr.rel (0) target = $region25
    $region24: #{reconstruction_loss.1} parent=1 // pred_region
      %123 = dma.done [#allocation4], 16
    $region25: #{reconstruction_loss.1} parent=1 // pred_fallthru
      _
    %124 = sfence
    %125 = vsyncpa [#allocation4], 1

</llo_original>
